<compile_context>
chip_gen: v6e
topology: v6e:2x2x1
jax: 0.10.0
libtpu: 0.0.40
codegen_flags: <defaults>
</compile_context>

<pallas_src>
import math
import functools

import jax
import jax.numpy as jnp
from jax import lax
from jax.experimental import pallas as pl
from jax.experimental.pallas import tpu as pltpu


def _global_pointer_kernel(hidden_ref,                       # (1, S, H)
                           wq_ref, wq2_ref, wk_ref, wk2_ref,  # (1, H, D) each
                           bq_ref, bq2_ref, bk_ref, bk2_ref,  # (1, 1, D) each
                           cos_ref, sin_ref,                  # (S, D)
                           mask_ref,                          # (1, 1, S)
                           out_ref):                          # (1, 1, S, S)
    f32 = jnp.float32

    # gate1(gate2(x)) = sigmoid(sigmoid(x))  -- EUP transcendentals, VPU slack.
    g = jax.nn.sigmoid(jax.nn.sigmoid(hidden_ref[0].astype(f32)))        # (S, H)

    cos = cos_ref[...]
    sin = sin_ref[...]

    # q/k projections for this head (MXU), with RoPE's signed pair-swap already
    # folded into wq2/wk2 (see wrapper).  q_rot = q*cos + (q@P)*sin.
    q = lax.dot_general(g, wq_ref[0], (((1,), (0,)), ((), ())),
                        preferred_element_type=f32) + bq_ref[0]
    q2 = lax.dot_general(g, wq2_ref[0], (((1,), (0,)), ((), ())),
                         preferred_element_type=f32) + bq2_ref[0]
    k = lax.dot_general(g, wk_ref[0], (((1,), (0,)), ((), ())),
                        preferred_element_type=f32) + bk_ref[0]
    k2 = lax.dot_general(g, wk2_ref[0], (((1,), (0,)), ((), ())),
                         preferred_element_type=f32) + bk2_ref[0]
    q = q * cos + q2 * sin
    k = k * cos + k2 * sin

    # scores[m, n] = sum_d q[m, d] * k[n, d]   (contraction on last dims, MXU)
    scores = lax.dot_general(q, k, (((1,), (1,)), ((), ())),
                             preferred_element_type=f32)                 # (S, S)

    s = scores.shape[0]
    d = cos.shape[-1]

    # key-side padding mask (matches the PyTorch broadcast: mask only over n)
    pad = mask_ref[0].astype(f32)                                        # (1, S)
    scores = scores * pad - (1.0 - pad) * 1e12

    # strict lower-triangle mask (m > n)
    row = lax.broadcasted_iota(jnp.int32, (s, s), 0)
    col = lax.broadcasted_iota(jnp.int32, (s, s), 1)
    scores = jnp.where(row > col, scores - 1e12, scores)

    out_ref[0, 0] = (scores * (1.0 / math.sqrt(float(d)))).astype(out_ref.dtype)


@functools.partial(jax.jit, static_argnames=("ent_type_size", "inner_dim", "rope"))
def global_pointer_forward(last_hidden_state, attention_mask, dense_w, dense_b,
                           *, ent_type_size, inner_dim, rope=True):
    """GlobalPointer head: (B,S,H), (B,S) -> (B, ent_type_size, S, S) logits."""
    B, S, H = last_hidden_state.shape
    heads, d = ent_type_size, inner_dim
    assert dense_w.shape == (H, heads * 2 * d)
    assert dense_b.shape == (heads * 2 * d,)
    if rope:
        assert d % 2 == 0, "inner_dim must be even for RoPE"

    # ---- one-time host-side parameter layout (weights only; no activation copies) ----
    w = dense_w.astype(jnp.float32).reshape(H, heads, 2 * d)
    wq = jnp.transpose(w[:, :, :d], (1, 0, 2))            # (heads, H, d)
    wk = jnp.transpose(w[:, :, d:], (1, 0, 2))
    b = dense_b.astype(jnp.float32).reshape(heads, 2 * d)
    bq = b[:, :d].reshape(heads, 1, d)
    bk = b[:, d:].reshape(heads, 1, d)

    # Signed pair-swap permutation P:  (x @ P)[2i] = -x[2i+1], (x @ P)[2i+1] = x[2i]
    i = jnp.arange(d)[:, None]
    j = jnp.arange(d)[None, :]
    P = ((j == i + 1) & (i % 2 == 0)).astype(jnp.float32) \
        - ((j == i - 1) & (i % 2 == 1)).astype(jnp.float32)
    wq2 = jnp.matmul(wq, P)                                # (heads, H, d)
    wk2 = jnp.matmul(wk, P)
    bq2 = jnp.matmul(bq, P)                                # (heads, 1, d)
    bk2 = jnp.matmul(bk, P)

    # Sinusoidal position embedding, already expanded to [c0,c0,c1,c1,...] layout.
    if rope:
        pos = jnp.arange(S, dtype=jnp.float32)[:, None]
        theta = jnp.power(10000.0, -2.0 * jnp.arange(d // 2, dtype=jnp.float32) / d)
        ang = pos * theta[None, :]                          # (S, d/2)
        cos = jnp.repeat(jnp.cos(ang), 2, axis=-1)          # (S, d)
        sin = jnp.repeat(jnp.sin(ang), 2, axis=-1)
    else:
        cos = jnp.ones((S, d), jnp.float32)
        sin = jnp.zeros((S, d), jnp.float32)

    hidden = last_hidden_state.astype(jnp.float32)
    mask3 = attention_mask.astype(jnp.float32).reshape(B, 1, S)

    grid = (B, heads)
    out = pl.pallas_call(
        _global_pointer_kernel,
        out_shape=jax.ShapeDtypeStruct((B, heads, S, S), jnp.float32),
        grid=grid,
        in_specs=[
            pl.BlockSpec((1, S, H), lambda b_, h_: (b_, 0, 0)),   # hidden
            pl.BlockSpec((1, H, d), lambda b_, h_: (h_, 0, 0)),   # wq
            pl.BlockSpec((1, H, d), lambda b_, h_: (h_, 0, 0)),   # wq2 (= wq @ P)
            pl.BlockSpec((1, H, d), lambda b_, h_: (h_, 0, 0)),   # wk
            pl.BlockSpec((1, H, d), lambda b_, h_: (h_, 0, 0)),   # wk2 (= wk @ P)
            pl.BlockSpec((1, 1, d), lambda b_, h_: (h_, 0, 0)),   # bq
            pl.BlockSpec((1, 1, d), lambda b_, h_: (h_, 0, 0)),   # bq2
            pl.BlockSpec((1, 1, d), lambda b_, h_: (h_, 0, 0)),   # bk
            pl.BlockSpec((1, 1, d), lambda b_, h_: (h_, 0, 0)),   # bk2
            pl.BlockSpec((S, d), lambda b_, h_: (0, 0)),          # cos
            pl.BlockSpec((S, d), lambda b_, h_: (0, 0)),          # sin
            pl.BlockSpec((1, 1, S), lambda b_, h_: (b_, 0, 0)),   # attention mask
        ],
        out_specs=pl.BlockSpec((1, 1, S, S), lambda b_, h_: (b_, h_, 0, 0)),
        compiler_params=pltpu.CompilerParams(
            dimension_semantics=("parallel", "parallel"),
        ),
    )(hidden, wq, wq2, wk, wk2, bq, bq2, bk, bk2, cos, sin, mask3)
    return out


# ----------------------------- pure-JAX reference -----------------------------
def _reference_global_pointer(last_hidden_state, attention_mask, W, b,
                              heads, d, rope=True):
    B, S, H = last_hidden_state.shape
    hp = jax.lax.Precision.HIGHEST
    g = jax.nn.sigmoid(jax.nn.sigmoid(last_hidden_state.astype(jnp.float32)))
    out = jnp.einsum("bsh,ho->bso", g, W.astype(jnp.float32), precision=hp) + b
    out = out.reshape(B, S, heads, 2 * d)                 # split(2d) + stack(dim=-2)
    qw, kw = out[..., :d], out[..., d:]
    if rope:
        pos = jnp.arange(S, dtype=jnp.float32)[:, None]
        theta = jnp.power(10000.0, -2.0 * jnp.arange(d // 2, dtype=jnp.float32) / d)
        ang = pos * theta[None, :]
        emb = jnp.stack([jnp.sin(ang), jnp.cos(ang)], axis=-1).reshape(S, d)
        cos_pos = jnp.repeat(emb[None, :, None, 1::2], 2, axis=-1)
        sin_pos = jnp.repeat(emb[None, :, None, 0::2], 2, axis=-1)

        def rot(x):
            x2 = jnp.stack([-x[..., 1::2], x[..., 0::2]], axis=-1).reshape(x.shape)
            return x * cos_pos + x2 * sin_pos

        qw, kw = rot(qw), rot(kw)
    logits = jnp.einsum("bmhd,bnhd->bhmn", qw, kw, precision=hp)
    pad = attention_mask.astype(jnp.float32)[:, None, None, :]
    logits = logits * pad - (1.0 - pad) * 1e12
    tri = jnp.tril(jnp.ones((S, S), jnp.float32), -1)
    logits = logits - tri * 1e12
    return logits / (d ** 0.5)


if __name__ == "__main__":
    key = jax.random.PRNGKey(0)
    B, S, H = 2, 8, 32
    ent_type_size, inner_dim = 4, 32

    k1, k2, k3 = jax.random.split(key, 3)
    last_hidden_state = jax.random.normal(k1, (B, S, H), dtype=jnp.float32)
    dense_w = 0.02 * jax.random.normal(
        k2, (H, ent_type_size * inner_dim * 2), dtype=jnp.float32)
    dense_b = 0.02 * jax.random.normal(
        k3, (ent_type_size * inner_dim * 2,), dtype=jnp.float32)
    attention_mask = jnp.array(
        [[1, 1, 1, 1, 1, 1, 1, 1],
         [1, 1, 1, 1, 1, 0, 0, 0]], dtype=jnp.float32)

    logits = global_pointer_forward(
        last_hidden_state, attention_mask, dense_w, dense_b,
        ent_type_size=ent_type_size, inner_dim=inner_dim, rope=True)
    jax.block_until_ready(logits)

    ref = _reference_global_pointer(
        last_hidden_state, attention_mask, dense_w, dense_b,
        ent_type_size, inner_dim, rope=True)

    assert logits.shape == (B, ent_type_size, S, S)
    assert logits.dtype == jnp.float32
    max_err = float(jnp.max(jnp.abs(logits - ref)))
    assert jnp.allclose(logits, ref, rtol=1e-3, atol=1e-3), f"max_err={max_err}"

    print("KERNEL_OK")
</pallas_src>

<mosaic_0001>
module attributes {stable_mosaic.version = 11 : i64} {
  func.func @_global_pointer_kernel(%arg0: i32, %arg1: i32, %arg2: memref<1x8x32xf32, #tpu.memory_space<vmem>>, %arg3: memref<1x32x32xf32, #tpu.memory_space<vmem>>, %arg4: memref<1x32x32xf32, #tpu.memory_space<vmem>>, %arg5: memref<1x32x32xf32, #tpu.memory_space<vmem>>, %arg6: memref<1x32x32xf32, #tpu.memory_space<vmem>>, %arg7: memref<1x1x32xf32, #tpu.memory_space<vmem>>, %arg8: memref<1x1x32xf32, #tpu.memory_space<vmem>>, %arg9: memref<1x1x32xf32, #tpu.memory_space<vmem>>, %arg10: memref<1x1x32xf32, #tpu.memory_space<vmem>>, %arg11: memref<8x32xf32, #tpu.memory_space<vmem>>, %arg12: memref<8x32xf32, #tpu.memory_space<vmem>>, %arg13: memref<1x1x8xf32, #tpu.memory_space<vmem>>, %arg14: memref<1x1x8x8xf32, #tpu.memory_space<vmem>>) attributes {dimension_semantics = [#tpu.dimension_semantics<parallel>, #tpu.dimension_semantics<parallel>], iteration_bounds = array<i64: 2, 4>, scalar_prefetch = 0 : i64, scratch_operands = 0 : i64, tpu.core_type = #tpu.core_type<tc>, window_params = [{transform_indices = @transform_0, window_bounds = array<i64: 1, 8, 32>}, {transform_indices = @transform_1, window_bounds = array<i64: 1, 32, 32>}, {transform_indices = @transform_2, window_bounds = array<i64: 1, 32, 32>}, {transform_indices = @transform_3, window_bounds = array<i64: 1, 32, 32>}, {transform_indices = @transform_4, window_bounds = array<i64: 1, 32, 32>}, {transform_indices = @transform_5, window_bounds = array<i64: 1, 1, 32>}, {transform_indices = @transform_6, window_bounds = array<i64: 1, 1, 32>}, {transform_indices = @transform_7, window_bounds = array<i64: 1, 1, 32>}, {transform_indices = @transform_8, window_bounds = array<i64: 1, 1, 32>}, {pipeline_mode = #tpu.pipeline_mode<synchronous>, transform_indices = @transform_9, window_bounds = array<i64: 8, 32>}, {pipeline_mode = #tpu.pipeline_mode<synchronous>, transform_indices = @transform_10, window_bounds = array<i64: 8, 32>}, {transform_indices = @transform_11, window_bounds = array<i64: 1, 1, 8>}, {transform_indices = @transform_12, window_bounds = array<i64: 1, 1, 8, 8>}]} {
    %c0 = arith.constant 0 : index
    %c0_0 = arith.constant 0 : index
    %c0_1 = arith.constant 0 : index
    %0 = vector.load %arg2[%c0, %c0_0, %c0_1] : memref<1x8x32xf32, #tpu.memory_space<vmem>>, vector<1x8x32xf32>
    %1 = vector.shape_cast %0 : vector<1x8x32xf32> to vector<8x32xf32>
    %2 = arith.negf %1 : vector<8x32xf32>
    %3 = math.exp %2 : vector<8x32xf32>
    %cst = arith.constant 1.000000e+00 : f32
    %4 = vector.broadcast %cst : f32 to vector<8x32xf32>
    %5 = arith.addf %4, %3 : vector<8x32xf32>
    %6 = arith.divf %4, %5 : vector<8x32xf32>
    %7 = arith.negf %6 : vector<8x32xf32>
    %8 = math.exp %7 : vector<8x32xf32>
    %cst_2 = arith.constant 1.000000e+00 : f32
    %9 = vector.broadcast %cst_2 : f32 to vector<8x32xf32>
    %10 = arith.addf %9, %8 : vector<8x32xf32>
    %11 = arith.divf %9, %10 : vector<8x32xf32>
    %c0_3 = arith.constant 0 : index
    %c0_4 = arith.constant 0 : index
    %12 = vector.load %arg11[%c0_3, %c0_4] : memref<8x32xf32, #tpu.memory_space<vmem>>, vector<8x32xf32>
    %c0_5 = arith.constant 0 : index
    %c0_6 = arith.constant 0 : index
    %13 = vector.load %arg12[%c0_5, %c0_6] : memref<8x32xf32, #tpu.memory_space<vmem>>, vector<8x32xf32>
    %c0_7 = arith.constant 0 : index
    %c0_8 = arith.constant 0 : index
    %c0_9 = arith.constant 0 : index
    %14 = vector.load %arg3[%c0_7, %c0_8, %c0_9] : memref<1x32x32xf32, #tpu.memory_space<vmem>>, vector<1x32x32xf32>
    %15 = vector.shape_cast %14 : vector<1x32x32xf32> to vector<32x32xf32>
    %cst_10 = arith.constant dense<0.000000e+00> : vector<8x32xf32>
    %16 = tpu.matmul %11, %15, %cst_10 {dimension_numbers = #tpu.dot_dimension_numbers<[1], [0], [0], [1], [0, 0, 1, 1], [], []>} : vector<8x32xf32>, vector<32x32xf32>, vector<8x32xf32> -> vector<8x32xf32>
    %c0_11 = arith.constant 0 : index
    %c0_12 = arith.constant 0 : index
    %c0_13 = arith.constant 0 : index
    %17 = vector.load %arg7[%c0_11, %c0_12, %c0_13] : memref<1x1x32xf32, #tpu.memory_space<vmem>>, vector<1x1x32xf32>
    %18 = vector.shape_cast %17 : vector<1x1x32xf32> to vector<1x32xf32>
    %19 = vector.broadcast %18 : vector<1x32xf32> to vector<8x32xf32>
    %20 = arith.addf %16, %19 : vector<8x32xf32>
    %c0_14 = arith.constant 0 : index
    %c0_15 = arith.constant 0 : index
    %c0_16 = arith.constant 0 : index
    %21 = vector.load %arg4[%c0_14, %c0_15, %c0_16] : memref<1x32x32xf32, #tpu.memory_space<vmem>>, vector<1x32x32xf32>
    %22 = vector.shape_cast %21 : vector<1x32x32xf32> to vector<32x32xf32>
    %cst_17 = arith.constant dense<0.000000e+00> : vector<8x32xf32>
    %23 = tpu.matmul %11, %22, %cst_17 {dimension_numbers = #tpu.dot_dimension_numbers<[1], [0], [0], [1], [0, 0, 1, 1], [], []>} : vector<8x32xf32>, vector<32x32xf32>, vector<8x32xf32> -> vector<8x32xf32>
    %c0_18 = arith.constant 0 : index
    %c0_19 = arith.constant 0 : index
    %c0_20 = arith.constant 0 : index
    %24 = vector.load %arg8[%c0_18, %c0_19, %c0_20] : memref<1x1x32xf32, #tpu.memory_space<vmem>>, vector<1x1x32xf32>
    %25 = vector.shape_cast %24 : vector<1x1x32xf32> to vector<1x32xf32>
    %26 = vector.broadcast %25 : vector<1x32xf32> to vector<8x32xf32>
    %27 = arith.addf %23, %26 : vector<8x32xf32>
    %c0_21 = arith.constant 0 : index
    %c0_22 = arith.constant 0 : index
    %c0_23 = arith.constant 0 : index
    %28 = vector.load %arg5[%c0_21, %c0_22, %c0_23] : memref<1x32x32xf32, #tpu.memory_space<vmem>>, vector<1x32x32xf32>
    %29 = vector.shape_cast %28 : vector<1x32x32xf32> to vector<32x32xf32>
    %cst_24 = arith.constant dense<0.000000e+00> : vector<8x32xf32>
    %30 = tpu.matmul %11, %29, %cst_24 {dimension_numbers = #tpu.dot_dimension_numbers<[1], [0], [0], [1], [0, 0, 1, 1], [], []>} : vector<8x32xf32>, vector<32x32xf32>, vector<8x32xf32> -> vector<8x32xf32>
    %c0_25 = arith.constant 0 : index
    %c0_26 = arith.constant 0 : index
    %c0_27 = arith.constant 0 : index
    %31 = vector.load %arg9[%c0_25, %c0_26, %c0_27] : memref<1x1x32xf32, #tpu.memory_space<vmem>>, vector<1x1x32xf32>
    %32 = vector.shape_cast %31 : vector<1x1x32xf32> to vector<1x32xf32>
    %33 = vector.broadcast %32 : vector<1x32xf32> to vector<8x32xf32>
    %34 = arith.addf %30, %33 : vector<8x32xf32>
    %c0_28 = arith.constant 0 : index
    %c0_29 = arith.constant 0 : index
    %c0_30 = arith.constant 0 : index
    %35 = vector.load %arg6[%c0_28, %c0_29, %c0_30] : memref<1x32x32xf32, #tpu.memory_space<vmem>>, vector<1x32x32xf32>
    %36 = vector.shape_cast %35 : vector<1x32x32xf32> to vector<32x32xf32>
    %cst_31 = arith.constant dense<0.000000e+00> : vector<8x32xf32>
    %37 = tpu.matmul %11, %36, %cst_31 {dimension_numbers = #tpu.dot_dimension_numbers<[1], [0], [0], [1], [0, 0, 1, 1], [], []>} : vector<8x32xf32>, vector<32x32xf32>, vector<8x32xf32> -> vector<8x32xf32>
    %c0_32 = arith.constant 0 : index
    %c0_33 = arith.constant 0 : index
    %c0_34 = arith.constant 0 : index
    %38 = vector.load %arg10[%c0_32, %c0_33, %c0_34] : memref<1x1x32xf32, #tpu.memory_space<vmem>>, vector<1x1x32xf32>
    %39 = vector.shape_cast %38 : vector<1x1x32xf32> to vector<1x32xf32>
    %40 = vector.broadcast %39 : vector<1x32xf32> to vector<8x32xf32>
    %41 = arith.addf %37, %40 : vector<8x32xf32>
    %42 = arith.mulf %20, %12 : vector<8x32xf32>
    %43 = arith.mulf %27, %13 : vector<8x32xf32>
    %44 = arith.addf %42, %43 : vector<8x32xf32>
    %45 = arith.mulf %34, %12 : vector<8x32xf32>
    %46 = arith.mulf %41, %13 : vector<8x32xf32>
    %47 = arith.addf %45, %46 : vector<8x32xf32>
    %cst_35 = arith.constant dense<0.000000e+00> : vector<8x8xf32>
    %48 = tpu.matmul %44, %47, %cst_35 {dimension_numbers = #tpu.dot_dimension_numbers<[1], [1], [0], [0], [0, 0, 1, 0], [], []>} : vector<8x32xf32>, vector<8x32xf32>, vector<8x8xf32> -> vector<8x8xf32>
    %c0_36 = arith.constant 0 : index
    %c0_37 = arith.constant 0 : index
    %c0_38 = arith.constant 0 : index
    %49 = vector.load %arg13[%c0_36, %c0_37, %c0_38] : memref<1x1x8xf32, #tpu.memory_space<vmem>>, vector<1x1x8xf32>
    %50 = vector.shape_cast %49 : vector<1x1x8xf32> to vector<1x8xf32>
    %51 = vector.broadcast %50 : vector<1x8xf32> to vector<8x8xf32>
    %52 = arith.mulf %48, %51 : vector<8x8xf32>
    %cst_39 = arith.constant 1.000000e+00 : f32
    %53 = vector.broadcast %cst_39 : f32 to vector<1x8xf32>
    %54 = arith.subf %53, %50 : vector<1x8xf32>
    %cst_40 = arith.constant 9.99999995E+11 : f32
    %55 = vector.broadcast %cst_40 : f32 to vector<1x8xf32>
    %56 = arith.mulf %54, %55 : vector<1x8xf32>
    %57 = vector.broadcast %56 : vector<1x8xf32> to vector<8x8xf32>
    %58 = arith.subf %52, %57 : vector<8x8xf32>
    %59 = tpu.iota {dimensions = array<i32: 0>} : vector<8x8xi32>
    %60 = tpu.iota {dimensions = array<i32: 1>} : vector<8x8xi32>
    %61 = arith.cmpi sgt, %59, %60 : vector<8x8xi32>
    %cst_41 = arith.constant 9.99999995E+11 : f32
    %62 = vector.broadcast %cst_41 : f32 to vector<8x8xf32>
    %63 = arith.subf %58, %62 : vector<8x8xf32>
    %64 = arith.select %61, %63, %58 : vector<8x8xi1>, vector<8x8xf32>
    %cst_42 = arith.constant 0.176776692 : f32
    %65 = vector.broadcast %cst_42 : f32 to vector<8x8xf32>
    %66 = arith.mulf %64, %65 : vector<8x8xf32>
    %c0_43 = arith.constant 0 : index
    %c0_44 = arith.constant 0 : index
    %c0_45 = arith.constant 0 : index
    %c0_46 = arith.constant 0 : index
    %67 = vector.load %arg14[%c0_43, %c0_44, %c0_45, %c0_46] : memref<1x1x8x8xf32, #tpu.memory_space<vmem>>, vector<1x1x8x8xf32>
    %68 = vector.shape_cast %67 : vector<1x1x8x8xf32> to vector<8x8xf32>
    %69 = vector.shape_cast %66 : vector<8x8xf32> to vector<1x1x8x8xf32>
    tpu.vector_store %arg14[%c0_43, %c0_44, %c0_45, %c0_46], %69 {strides = array<i32>} : memref<1x1x8x8xf32, #tpu.memory_space<vmem>>, vector<1x1x8x8xf32>,
    return
  }
  func.func @transform_0(%arg0: i32, %arg1: i32) -> (i32, i32, i32) {
    %c0_i32 = arith.constant 0 : i32
    %c0_i32_0 = arith.constant 0 : i32
    %c0_i32_1 = arith.constant 0 : i32
    return %arg0, %c0_i32, %c0_i32_0 : i32, i32, i32
  }
  func.func @transform_1(%arg0: i32, %arg1: i32) -> (i32, i32, i32) {
    %c0_i32 = arith.constant 0 : i32
    %c0_i32_0 = arith.constant 0 : i32
    %c0_i32_1 = arith.constant 0 : i32
    return %arg1, %c0_i32, %c0_i32_0 : i32, i32, i32
  }
  func.func @transform_2(%arg0: i32, %arg1: i32) -> (i32, i32, i32) {
    %c0_i32 = arith.constant 0 : i32
    %c0_i32_0 = arith.constant 0 : i32
    %c0_i32_1 = arith.constant 0 : i32
    return %arg1, %c0_i32, %c0_i32_0 : i32, i32, i32
  }
  func.func @transform_3(%arg0: i32, %arg1: i32) -> (i32, i32, i32) {
    %c0_i32 = arith.constant 0 : i32
    %c0_i32_0 = arith.constant 0 : i32
    %c0_i32_1 = arith.constant 0 : i32
    return %arg1, %c0_i32, %c0_i32_0 : i32, i32, i32
  }
  func.func @transform_4(%arg0: i32, %arg1: i32) -> (i32, i32, i32) {
    %c0_i32 = arith.constant 0 : i32
    %c0_i32_0 = arith.constant 0 : i32
    %c0_i32_1 = arith.constant 0 : i32
    return %arg1, %c0_i32, %c0_i32_0 : i32, i32, i32
  }
  func.func @transform_5(%arg0: i32, %arg1: i32) -> (i32, i32, i32) {
    %c0_i32 = arith.constant 0 : i32
    %c0_i32_0 = arith.constant 0 : i32
    %c0_i32_1 = arith.constant 0 : i32
    return %arg1, %c0_i32, %c0_i32_0 : i32, i32, i32
  }
  func.func @transform_6(%arg0: i32, %arg1: i32) -> (i32, i32, i32) {
    %c0_i32 = arith.constant 0 : i32
    %c0_i32_0 = arith.constant 0 : i32
    %c0_i32_1 = arith.constant 0 : i32
    return %arg1, %c0_i32, %c0_i32_0 : i32, i32, i32
  }
  func.func @transform_7(%arg0: i32, %arg1: i32) -> (i32, i32, i32) {
    %c0_i32 = arith.constant 0 : i32
    %c0_i32_0 = arith.constant 0 : i32
    %c0_i32_1 = arith.constant 0 : i32
    return %arg1, %c0_i32, %c0_i32_0 : i32, i32, i32
  }
  func.func @transform_8(%arg0: i32, %arg1: i32) -> (i32, i32, i32) {
    %c0_i32 = arith.constant 0 : i32
    %c0_i32_0 = arith.constant 0 : i32
    %c0_i32_1 = arith.constant 0 : i32
    return %arg1, %c0_i32, %c0_i32_0 : i32, i32, i32
  }
  func.func @transform_9(%arg0: i32, %arg1: i32) -> (i32, i32) {
    %c0_i32 = arith.constant 0 : i32
    %c0_i32_0 = arith.constant 0 : i32
    %c0_i32_1 = arith.constant 0 : i32
    return %c0_i32, %c0_i32_0 : i32, i32
  }
  func.func @transform_10(%arg0: i32, %arg1: i32) -> (i32, i32) {
    %c0_i32 = arith.constant 0 : i32
    %c0_i32_0 = arith.constant 0 : i32
    %c0_i32_1 = arith.constant 0 : i32
    return %c0_i32, %c0_i32_0 : i32, i32
  }
  func.func @transform_11(%arg0: i32, %arg1: i32) -> (i32, i32, i32) {
    %c0_i32 = arith.constant 0 : i32
    %c0_i32_0 = arith.constant 0 : i32
    %c0_i32_1 = arith.constant 0 : i32
    return %arg0, %c0_i32, %c0_i32_0 : i32, i32, i32
  }
  func.func @transform_12(%arg0: i32, %arg1: i32) -> (i32, i32, i32, i32) {
    %c0_i32 = arith.constant 0 : i32
    %c0_i32_0 = arith.constant 0 : i32
    %c0_i32_1 = arith.constant 0 : i32
    return %arg0, %arg1, %c0_i32, %c0_i32_0 : i32, i32, i32, i32
  }
}

</mosaic_0001>

<llo_original>
// kernel: global_pointer_forward.1
$region0: #{global_pointer_forward.1}
  #allocation0 [shape = 'u32[]', space=smem, size = 0x4, offset = 0x4, fixed_abs, tag = 'smem constant byte address 0x4 - core index']
  #allocation1 [shape = 'u32[144,128]{1,0:T(1,128)}', space=vmem, size = 0x12000, scoped, tag = 'internal scratch']
  %s0 = inlined_call_operand.vmem [shape: f32[2,8,32], index: 0, kind: input, shape index: {}]
  %s1 = inlined_call_operand.vmem [shape: f32[4,32,32], index: 1, kind: input, shape index: {}]
  %s2 = inlined_call_operand.vmem [shape: f32[4,32,32], index: 2, kind: input, shape index: {}]
  %s3 = inlined_call_operand.vmem [shape: f32[4,32,32], index: 3, kind: input, shape index: {}]
  %s4 = inlined_call_operand.vmem [shape: f32[4,32,32], index: 4, kind: input, shape index: {}]
  %s5 = inlined_call_operand.vmem [shape: f32[4,1,32], index: 5, kind: input, shape index: {}]
  %s6 = inlined_call_operand.vmem [shape: f32[4,1,32], index: 6, kind: input, shape index: {}]
  %s7 = inlined_call_operand.vmem [shape: f32[4,1,32], index: 7, kind: input, shape index: {}]
  %s8 = inlined_call_operand.vmem [shape: f32[4,1,32], index: 8, kind: input, shape index: {}]
  %s9 = inlined_call_operand.vmem [shape: f32[8,32], index: 9, kind: input, shape index: {}]
  %s10 = inlined_call_operand.vmem [shape: f32[8,32], index: 10, kind: input, shape index: {}]
  %s11 = inlined_call_operand.vmem [shape: f32[2,1,8], index: 11, kind: input, shape index: {}]
  %s12 = inlined_call_operand.hbm [shape: f32[2,4,8,8], index: 12, kind: output, shape index: {}]
  %s13 = sld [smem:[#allocation0]]
  $region81: #{global_pointer_forward.1} parent=0
    _
  %s15 = ssub.s32 1, %s13
  %s16 = scalar_select 0, %s15, %s13
  $region1: #{global_pointer_forward.1} parent=0
    #allocation2 [shape = 'u8[8192]{0}', space=vmem, size = 0x2000, scoped, tag = 'output window, operand 0']
    #allocation3 [shape = 's32[2]{0}', space=sflag, size = 0x8, scoped, tag = 'scoped memory for global_pointer_forward.1']
    %17 = vsyncpa [#allocation3], 0
    %s18 = scalar_lea.sflag [#allocation3], 1
    %19 = vsyncpa %s18, 0
    loop: start=0, step=1, limit=10
    $region2: #{global_pointer_forward.1} parent=1 // loop_pre_header
      _
    $region3: #{global_pointer_forward.1} parent=1 // loop_header
      %s21 = sphi 0, %s25
      %p22 = scmp.ge.s32.totalorder %s21, 10
      %s28 = sphi 0, %s40
      %s29 = sphi 0, %s36
      %s30 = sphi 0, %s28
      %s31 = sphi 0, %s29
      %s32 = sphi 0, %s30
      %s33 = sphi 0, %s31
      %s43 = sphi 0, %s45
      %s46 = sphi 0, %s43
      %s47 = sphi 0, %s46
      %s63 = sphi 0, %s47
      %s69 = sphi 0, %s71
      %s72 = sphi 0, %s69
      %s73 = sphi 0, %s72
      %s89 = sphi 0, %s73
      %s95 = sphi 0, %s97
      %s98 = sphi 0, %s95
      %s99 = sphi 0, %s98
      %s115 = sphi 0, %s99
      %s121 = sphi 0, %s123
      %s124 = sphi 0, %s121
      %s125 = sphi 0, %s124
      %s141 = sphi 0, %s125
      %s147 = sphi 0, %s149
      %s150 = sphi 0, %s147
      %s151 = sphi 0, %s150
      %s167 = sphi 0, %s151
      %s173 = sphi 0, %s175
      %s176 = sphi 0, %s173
      %s177 = sphi 0, %s176
      %s193 = sphi 0, %s177
      %s199 = sphi 0, %s201
      %s202 = sphi 0, %s199
      %s203 = sphi 0, %s202
      %s219 = sphi 0, %s203
      %s225 = sphi 0, %s227
      %s228 = sphi 0, %s225
      %s229 = sphi 0, %s228
      %s245 = sphi 0, %s229
      %s251 = sphi 0, %s253
      %s254 = sphi 0, %s251
      %s255 = sphi 0, %s254
      %s271 = sphi 0, %s255
      %s275 = sphi 0, %s275
      %s277 = sphi 0, %s275
      %s278 = sphi 0, %s277
      %s292 = sphi 0, %s278
      %s296 = sphi 0, %s296
      %s298 = sphi 0, %s296
      %s299 = sphi 0, %s298
      %s313 = sphi 0, %s299
      %s319 = sphi 0, %s321
      %s322 = sphi 0, %s319
      %s323 = sphi 0, %s322
      %s339 = sphi 0, %s323
      %s347 = sphi 0, %s349
      %s350 = sphi 0, %s347
      %s351 = sphi 0, %s350
      %s367 = sphi 0, %s351
    $region4: #{global_pointer_forward.1} parent=1 // loop_header_branch
      %24 = sbr.rel (%p22) target = $region8
    $region5: #{global_pointer_forward.1} parent=1 // loop_body
      %s26 = ssub.s32 %s21, 1
      %s27 = ssub.s32 %s21, 2
      %s34 = sadd.s32 1, %s29
      %p35 = scmp.ge.s32.totalorder %s34, 4
      %s36 = scalar_select %p35, 0, %s34
      %s37 = sadd.s32 1, %s28
      %s38 = scalar_select %p35, %s37, %s28
      %p39 = scmp.ge.s32.totalorder %s38, 2
      %s40 = scalar_select %p39, 0, %s38
      %s41 = ssub.s32 %s28, %s40
      %p42 = scmp.eq.s32.totalorder %s41, 0
      %s44 = sadd.s32 %s43, 1
      %s45 = scalar_select %p42, %s43, %s44
      %p48 = pneg %p42
      %p49 = scmp.eq.s32.totalorder %s21, 7
      %p50 = por %p48, %p49
      %p51 = scmp.ne.s32.totalorder %s43, %s46
      %p52 = scmp.eq.s32.totalorder %s21, 0
      %p53 = por %p51, %p52
      %p54 = scmp.ne.s32.totalorder %s43, %s46
      %p55 = scmp.eq.s32.totalorder %s26, 7
      %p56 = por %p54, %p55
      %p57 = scmp.ne.s32.totalorder %s46, %s47
      %p58 = scmp.eq.s32.totalorder %s26, 0
      %p59 = por %p57, %p58
      %p60 = scmp.ne.s32.totalorder %s46, %s47
      %p61 = scmp.eq.s32.totalorder %s27, 7
      %p62 = por %p60, %p61
      %p64 = scmp.ne.s32.totalorder %s47, %s63
      %p65 = scmp.eq.s32.totalorder %s27, 0
      %p66 = por %p64, %p65
      %s67 = ssub.s32 %s29, %s36
      %p68 = scmp.eq.s32.totalorder %s67, 0
      %s70 = sadd.s32 %s69, 1
      %s71 = scalar_select %p68, %s69, %s70
      %p74 = pneg %p68
      %p75 = scmp.eq.s32.totalorder %s21, 7
      %p76 = por %p74, %p75
      %p77 = scmp.ne.s32.totalorder %s69, %s72
      %p78 = scmp.eq.s32.totalorder %s21, 0
      %p79 = por %p77, %p78
      %p80 = scmp.ne.s32.totalorder %s69, %s72
      %p81 = scmp.eq.s32.totalorder %s26, 7
      %p82 = por %p80, %p81
      %p83 = scmp.ne.s32.totalorder %s72, %s73
      %p84 = scmp.eq.s32.totalorder %s26, 0
      %p85 = por %p83, %p84
      %p86 = scmp.ne.s32.totalorder %s72, %s73
      %p87 = scmp.eq.s32.totalorder %s27, 7
      %p88 = por %p86, %p87
      %p90 = scmp.ne.s32.totalorder %s73, %s89
      %p91 = scmp.eq.s32.totalorder %s27, 0
      %p92 = por %p90, %p91
      %s93 = ssub.s32 %s29, %s36
      %p94 = scmp.eq.s32.totalorder %s93, 0
      %s96 = sadd.s32 %s95, 1
      %s97 = scalar_select %p94, %s95, %s96
      %p100 = pneg %p94
      %p101 = scmp.eq.s32.totalorder %s21, 7
      %p102 = por %p100, %p101
      %p103 = scmp.ne.s32.totalorder %s95, %s98
      %p104 = scmp.eq.s32.totalorder %s21, 0
      %p105 = por %p103, %p104
      %p106 = scmp.ne.s32.totalorder %s95, %s98
      %p107 = scmp.eq.s32.totalorder %s26, 7
      %p108 = por %p106, %p107
      %p109 = scmp.ne.s32.totalorder %s98, %s99
      %p110 = scmp.eq.s32.totalorder %s26, 0
      %p111 = por %p109, %p110
      %p112 = scmp.ne.s32.totalorder %s98, %s99
      %p113 = scmp.eq.s32.totalorder %s27, 7
      %p114 = por %p112, %p113
      %p116 = scmp.ne.s32.totalorder %s99, %s115
      %p117 = scmp.eq.s32.totalorder %s27, 0
      %p118 = por %p116, %p117
      %s119 = ssub.s32 %s29, %s36
      %p120 = scmp.eq.s32.totalorder %s119, 0
      %s122 = sadd.s32 %s121, 1
      %s123 = scalar_select %p120, %s121, %s122
      %p126 = pneg %p120
      %p127 = scmp.eq.s32.totalorder %s21, 7
      %p128 = por %p126, %p127
      %p129 = scmp.ne.s32.totalorder %s121, %s124
      %p130 = scmp.eq.s32.totalorder %s21, 0
      %p131 = por %p129, %p130
      %p132 = scmp.ne.s32.totalorder %s121, %s124
      %p133 = scmp.eq.s32.totalorder %s26, 7
      %p134 = por %p132, %p133
      %p135 = scmp.ne.s32.totalorder %s124, %s125
      %p136 = scmp.eq.s32.totalorder %s26, 0
      %p137 = por %p135, %p136
      %p138 = scmp.ne.s32.totalorder %s124, %s125
      %p139 = scmp.eq.s32.totalorder %s27, 7
      %p140 = por %p138, %p139
      %p142 = scmp.ne.s32.totalorder %s125, %s141
      %p143 = scmp.eq.s32.totalorder %s27, 0
      %p144 = por %p142, %p143
      %s145 = ssub.s32 %s29, %s36
      %p146 = scmp.eq.s32.totalorder %s145, 0
      %s148 = sadd.s32 %s147, 1
      %s149 = scalar_select %p146, %s147, %s148
      %p152 = pneg %p146
      %p153 = scmp.eq.s32.totalorder %s21, 7
      %p154 = por %p152, %p153
      %p155 = scmp.ne.s32.totalorder %s147, %s150
      %p156 = scmp.eq.s32.totalorder %s21, 0
      %p157 = por %p155, %p156
      %p158 = scmp.ne.s32.totalorder %s147, %s150
      %p159 = scmp.eq.s32.totalorder %s26, 7
      %p160 = por %p158, %p159
      %p161 = scmp.ne.s32.totalorder %s150, %s151
      %p162 = scmp.eq.s32.totalorder %s26, 0
      %p163 = por %p161, %p162
      %p164 = scmp.ne.s32.totalorder %s150, %s151
      %p165 = scmp.eq.s32.totalorder %s27, 7
      %p166 = por %p164, %p165
      %p168 = scmp.ne.s32.totalorder %s151, %s167
      %p169 = scmp.eq.s32.totalorder %s27, 0
      %p170 = por %p168, %p169
      %s171 = ssub.s32 %s29, %s36
      %p172 = scmp.eq.s32.totalorder %s171, 0
      %s174 = sadd.s32 %s173, 1
      %s175 = scalar_select %p172, %s173, %s174
      %p178 = pneg %p172
      %p179 = scmp.eq.s32.totalorder %s21, 7
      %p180 = por %p178, %p179
      %p181 = scmp.ne.s32.totalorder %s173, %s176
      %p182 = scmp.eq.s32.totalorder %s21, 0
      %p183 = por %p181, %p182
      %p184 = scmp.ne.s32.totalorder %s173, %s176
      %p185 = scmp.eq.s32.totalorder %s26, 7
      %p186 = por %p184, %p185
      %p187 = scmp.ne.s32.totalorder %s176, %s177
      %p188 = scmp.eq.s32.totalorder %s26, 0
      %p189 = por %p187, %p188
      %p190 = scmp.ne.s32.totalorder %s176, %s177
      %p191 = scmp.eq.s32.totalorder %s27, 7
      %p192 = por %p190, %p191
      %p194 = scmp.ne.s32.totalorder %s177, %s193
      %p195 = scmp.eq.s32.totalorder %s27, 0
      %p196 = por %p194, %p195
      %s197 = ssub.s32 %s29, %s36
      %p198 = scmp.eq.s32.totalorder %s197, 0
      %s200 = sadd.s32 %s199, 1
      %s201 = scalar_select %p198, %s199, %s200
      %p204 = pneg %p198
      %p205 = scmp.eq.s32.totalorder %s21, 7
      %p206 = por %p204, %p205
      %p207 = scmp.ne.s32.totalorder %s199, %s202
      %p208 = scmp.eq.s32.totalorder %s21, 0
      %p209 = por %p207, %p208
      %p210 = scmp.ne.s32.totalorder %s199, %s202
      %p211 = scmp.eq.s32.totalorder %s26, 7
      %p212 = por %p210, %p211
      %p213 = scmp.ne.s32.totalorder %s202, %s203
      %p214 = scmp.eq.s32.totalorder %s26, 0
      %p215 = por %p213, %p214
      %p216 = scmp.ne.s32.totalorder %s202, %s203
      %p217 = scmp.eq.s32.totalorder %s27, 7
      %p218 = por %p216, %p217
      %p220 = scmp.ne.s32.totalorder %s203, %s219
      %p221 = scmp.eq.s32.totalorder %s27, 0
      %p222 = por %p220, %p221
      %s223 = ssub.s32 %s29, %s36
      %p224 = scmp.eq.s32.totalorder %s223, 0
      %s226 = sadd.s32 %s225, 1
      %s227 = scalar_select %p224, %s225, %s226
      %p230 = pneg %p224
      %p231 = scmp.eq.s32.totalorder %s21, 7
      %p232 = por %p230, %p231
      %p233 = scmp.ne.s32.totalorder %s225, %s228
      %p234 = scmp.eq.s32.totalorder %s21, 0
      %p235 = por %p233, %p234
      %p236 = scmp.ne.s32.totalorder %s225, %s228
      %p237 = scmp.eq.s32.totalorder %s26, 7
      %p238 = por %p236, %p237
      %p239 = scmp.ne.s32.totalorder %s228, %s229
      %p240 = scmp.eq.s32.totalorder %s26, 0
      %p241 = por %p239, %p240
      %p242 = scmp.ne.s32.totalorder %s228, %s229
      %p243 = scmp.eq.s32.totalorder %s27, 7
      %p244 = por %p242, %p243
      %p246 = scmp.ne.s32.totalorder %s229, %s245
      %p247 = scmp.eq.s32.totalorder %s27, 0
      %p248 = por %p246, %p247
      %s249 = ssub.s32 %s29, %s36
      %p250 = scmp.eq.s32.totalorder %s249, 0
      %s252 = sadd.s32 %s251, 1
      %s253 = scalar_select %p250, %s251, %s252
      %p256 = pneg %p250
      %p257 = scmp.eq.s32.totalorder %s21, 7
      %p258 = por %p256, %p257
      %p259 = scmp.ne.s32.totalorder %s251, %s254
      %p260 = scmp.eq.s32.totalorder %s21, 0
      %p261 = por %p259, %p260
      %p262 = scmp.ne.s32.totalorder %s251, %s254
      %p263 = scmp.eq.s32.totalorder %s26, 7
      %p264 = por %p262, %p263
      %p265 = scmp.ne.s32.totalorder %s254, %s255
      %p266 = scmp.eq.s32.totalorder %s26, 0
      %p267 = por %p265, %p266
      %p268 = scmp.ne.s32.totalorder %s254, %s255
      %p269 = scmp.eq.s32.totalorder %s27, 7
      %p270 = por %p268, %p269
      %p272 = scmp.ne.s32.totalorder %s255, %s271
      %p273 = scmp.eq.s32.totalorder %s27, 0
      %p274 = por %p272, %p273
      %s276 = sadd.s32 %s275, 1
      %p279 = scmp.eq.s32.totalorder %s21, 7
      %p280 = scmp.ne.s32.totalorder %s275, %s277
      %p281 = scmp.eq.s32.totalorder %s21, 0
      %p282 = por %p280, %p281
      %p283 = scmp.ne.s32.totalorder %s275, %s277
      %p284 = scmp.eq.s32.totalorder %s26, 7
      %p285 = por %p283, %p284
      %p286 = scmp.ne.s32.totalorder %s277, %s278
      %p287 = scmp.eq.s32.totalorder %s26, 0
      %p288 = por %p286, %p287
      %p289 = scmp.ne.s32.totalorder %s277, %s278
      %p290 = scmp.eq.s32.totalorder %s27, 7
      %p291 = por %p289, %p290
      %p293 = scmp.ne.s32.totalorder %s278, %s292
      %p294 = scmp.eq.s32.totalorder %s27, 0
      %p295 = por %p293, %p294
      %s297 = sadd.s32 %s296, 1
      %p300 = scmp.eq.s32.totalorder %s21, 7
      %p301 = scmp.ne.s32.totalorder %s296, %s298
      %p302 = scmp.eq.s32.totalorder %s21, 0
      %p303 = por %p301, %p302
      %p304 = scmp.ne.s32.totalorder %s296, %s298
      %p305 = scmp.eq.s32.totalorder %s26, 7
      %p306 = por %p304, %p305
      %p307 = scmp.ne.s32.totalorder %s298, %s299
      %p308 = scmp.eq.s32.totalorder %s26, 0
      %p309 = por %p307, %p308
      %p310 = scmp.ne.s32.totalorder %s298, %s299
      %p311 = scmp.eq.s32.totalorder %s27, 7
      %p312 = por %p310, %p311
      %p314 = scmp.ne.s32.totalorder %s299, %s313
      %p315 = scmp.eq.s32.totalorder %s27, 0
      %p316 = por %p314, %p315
      %s317 = ssub.s32 %s28, %s40
      %p318 = scmp.eq.s32.totalorder %s317, 0
      %s320 = sadd.s32 %s319, 1
      %s321 = scalar_select %p318, %s319, %s320
      %p324 = pneg %p318
      %p325 = scmp.eq.s32.totalorder %s21, 7
      %p326 = por %p324, %p325
      %p327 = scmp.ne.s32.totalorder %s319, %s322
      %p328 = scmp.eq.s32.totalorder %s21, 0
      %p329 = por %p327, %p328
      %p330 = scmp.ne.s32.totalorder %s319, %s322
      %p331 = scmp.eq.s32.totalorder %s26, 7
      %p332 = por %p330, %p331
      %p333 = scmp.ne.s32.totalorder %s322, %s323
      %p334 = scmp.eq.s32.totalorder %s26, 0
      %p335 = por %p333, %p334
      %p336 = scmp.ne.s32.totalorder %s322, %s323
      %p337 = scmp.eq.s32.totalorder %s27, 7
      %p338 = por %p336, %p337
      %p340 = scmp.ne.s32.totalorder %s323, %s339
      %p341 = scmp.eq.s32.totalorder %s27, 0
      %p342 = por %p340, %p341
      %s343 = ssub.s32 %s28, %s40
      %s344 = ssub.s32 %s29, %s36
      %s345 = sor.u32 %s343, %s344
      %p346 = scmp.eq.s32.totalorder %s345, 0
      %s348 = sadd.s32 %s347, 1
      %s349 = scalar_select %p346, %s347, %s348
      %p352 = pneg %p346
      %p353 = scmp.eq.s32.totalorder %s21, 7
      %p354 = por %p352, %p353
      %p355 = scmp.ne.s32.totalorder %s347, %s350
      %p356 = scmp.eq.s32.totalorder %s21, 0
      %p357 = por %p355, %p356
      %p358 = scmp.ne.s32.totalorder %s347, %s350
      %p359 = scmp.eq.s32.totalorder %s26, 7
      %p360 = por %p358, %p359
      %p361 = scmp.ne.s32.totalorder %s350, %s351
      %p362 = scmp.eq.s32.totalorder %s26, 0
      %p363 = por %p361, %p362
      %p364 = scmp.ne.s32.totalorder %s350, %s351
      %p365 = scmp.eq.s32.totalorder %s27, 7
      %p366 = por %p364, %p365
      %p368 = scmp.ne.s32.totalorder %s351, %s367
      %p369 = scmp.eq.s32.totalorder %s27, 0
      %p370 = por %p368, %p369
      %p371 = scmp.le.s32.totalorder 1, %s21
      %p372 = scmp.lt.s32.totalorder %s21, 9
      %p373 = pnand %p371, %p372
      %p374 = pneg %p373
      // Predicated region
      $region9: #{global_pointer_forward.1} parent=5 // pred_check
        _
      $region10: #{global_pointer_forward.1} parent=5 // pred_check_branch
        %376 = sbr.rel (%p373) target = $region12
      $region11: #{global_pointer_forward.1} parent=5 // pred_region
        %s377 = ssub.s32 %s21, 1
        // Predicated region
        $region13: #{global_pointer_forward.1} parent=11 // pred_check
          %p378 = pneg %p288
        $region14: #{global_pointer_forward.1} parent=11 // pred_check_branch
          %380 = sbr.rel (%p378) target = $region16
        $region15: #{global_pointer_forward.1} parent=11 // pred_region
          _
        $region16: #{global_pointer_forward.1} parent=11 // pred_fallthru
          _
        // Predicated region
        $region17: #{global_pointer_forward.1} parent=11 // pred_check
          %p381 = pneg %p309
        $region18: #{global_pointer_forward.1} parent=11 // pred_check_branch
          %383 = sbr.rel (%p381) target = $region20
        $region19: #{global_pointer_forward.1} parent=11 // pred_region
          _
        $region20: #{global_pointer_forward.1} parent=11 // pred_fallthru
          _
      $region12: #{global_pointer_forward.1} parent=5 // pred_fallthru
        _
      %p384 = scmp.lt.s32.totalorder %s21, 8
      // Predicated region
      $region21: #{global_pointer_forward.1} parent=5 // pred_check
        %p385 = pneg %p384
      $region22: #{global_pointer_forward.1} parent=5 // pred_check_branch
        %387 = sbr.rel (%p385) target = $region24
      $region23: #{global_pointer_forward.1} parent=5 // pred_region
        // Predicated region
        $region25: #{global_pointer_forward.1} parent=23 // pred_check
          %p388 = pneg %p53
        $region26: #{global_pointer_forward.1} parent=23 // pred_check_branch
          %390 = sbr.rel (%p388) target = $region28
        $region27: #{global_pointer_forward.1} parent=23 // pred_region
          %p391 = scmp.lt.s32.totalorder %s28, 1
          %s392 = scalar_select %p391, %s28, 1
          %s393 = smul.addr %s392, 8
          %s394 = scalar_lea.vmem %s0, %s393
        $region28: #{global_pointer_forward.1} parent=23 // pred_fallthru
          _
        // Predicated region
        $region29: #{global_pointer_forward.1} parent=23 // pred_check
          %p395 = pneg %p79
        $region30: #{global_pointer_forward.1} parent=23 // pred_check_branch
          %397 = sbr.rel (%p395) target = $region32
        $region31: #{global_pointer_forward.1} parent=23 // pred_region
          %p398 = scmp.lt.s32.totalorder %s29, 3
          %s399 = scalar_select %p398, %s29, 3
          %s400 = smul.addr %s399, 4
          %s401 = smul.addr %s400, 8
          %s402 = scalar_lea.vmem %s1, %s401
        $region32: #{global_pointer_forward.1} parent=23 // pred_fallthru
          _
        // Predicated region
        $region33: #{global_pointer_forward.1} parent=23 // pred_check
          %p403 = pneg %p105
        $region34: #{global_pointer_forward.1} parent=23 // pred_check_branch
          %405 = sbr.rel (%p403) target = $region36
        $region35: #{global_pointer_forward.1} parent=23 // pred_region
          %p406 = scmp.lt.s32.totalorder %s29, 3
          %s407 = scalar_select %p406, %s29, 3
          %s408 = smul.addr %s407, 4
          %s409 = smul.addr %s408, 8
          %s410 = scalar_lea.vmem %s2, %s409
        $region36: #{global_pointer_forward.1} parent=23 // pred_fallthru
          _
        // Predicated region
        $region37: #{global_pointer_forward.1} parent=23 // pred_check
          %p411 = pneg %p131
        $region38: #{global_pointer_forward.1} parent=23 // pred_check_branch
          %413 = sbr.rel (%p411) target = $region40
        $region39: #{global_pointer_forward.1} parent=23 // pred_region
          %p414 = scmp.lt.s32.totalorder %s29, 3
          %s415 = scalar_select %p414, %s29, 3
          %s416 = smul.addr %s415, 4
          %s417 = smul.addr %s416, 8
          %s418 = scalar_lea.vmem %s3, %s417
        $region40: #{global_pointer_forward.1} parent=23 // pred_fallthru
          _
        // Predicated region
        $region41: #{global_pointer_forward.1} parent=23 // pred_check
          %p419 = pneg %p157
        $region42: #{global_pointer_forward.1} parent=23 // pred_check_branch
          %421 = sbr.rel (%p419) target = $region44
        $region43: #{global_pointer_forward.1} parent=23 // pred_region
          %p422 = scmp.lt.s32.totalorder %s29, 3
          %s423 = scalar_select %p422, %s29, 3
          %s424 = smul.addr %s423, 4
          %s425 = smul.addr %s424, 8
          %s426 = scalar_lea.vmem %s4, %s425
        $region44: #{global_pointer_forward.1} parent=23 // pred_fallthru
          _
        // Predicated region
        $region45: #{global_pointer_forward.1} parent=23 // pred_check
          %p427 = pneg %p183
        $region46: #{global_pointer_forward.1} parent=23 // pred_check_branch
          %429 = sbr.rel (%p427) target = $region48
        $region47: #{global_pointer_forward.1} parent=23 // pred_region
          %p430 = scmp.lt.s32.totalorder %s29, 3
          %s431 = scalar_select %p430, %s29, 3
          %s432 = scalar_lea.vmem %s5, %s431
        $region48: #{global_pointer_forward.1} parent=23 // pred_fallthru
          _
        // Predicated region
        $region49: #{global_pointer_forward.1} parent=23 // pred_check
          %p433 = pneg %p209
        $region50: #{global_pointer_forward.1} parent=23 // pred_check_branch
          %435 = sbr.rel (%p433) target = $region52
        $region51: #{global_pointer_forward.1} parent=23 // pred_region
          %p436 = scmp.lt.s32.totalorder %s29, 3
          %s437 = scalar_select %p436, %s29, 3
          %s438 = scalar_lea.vmem %s6, %s437
        $region52: #{global_pointer_forward.1} parent=23 // pred_fallthru
          _
        // Predicated region
        $region53: #{global_pointer_forward.1} parent=23 // pred_check
          %p439 = pneg %p235
        $region54: #{global_pointer_forward.1} parent=23 // pred_check_branch
          %441 = sbr.rel (%p439) target = $region56
        $region55: #{global_pointer_forward.1} parent=23 // pred_region
          %p442 = scmp.lt.s32.totalorder %s29, 3
          %s443 = scalar_select %p442, %s29, 3
          %s444 = scalar_lea.vmem %s7, %s443
        $region56: #{global_pointer_forward.1} parent=23 // pred_fallthru
          _
        // Predicated region
        $region57: #{global_pointer_forward.1} parent=23 // pred_check
          %p445 = pneg %p261
        $region58: #{global_pointer_forward.1} parent=23 // pred_check_branch
          %447 = sbr.rel (%p445) target = $region60
        $region59: #{global_pointer_forward.1} parent=23 // pred_region
          %p448 = scmp.lt.s32.totalorder %s29, 3
          %s449 = scalar_select %p448, %s29, 3
          %s450 = scalar_lea.vmem %s8, %s449
        $region60: #{global_pointer_forward.1} parent=23 // pred_fallthru
          _
        // Predicated region
        $region61: #{global_pointer_forward.1} parent=23 // pred_check
          %p451 = pneg %p329
        $region62: #{global_pointer_forward.1} parent=23 // pred_check_branch
          %453 = sbr.rel (%p451) target = $region64
        $region63: #{global_pointer_forward.1} parent=23 // pred_region
          %p454 = scmp.lt.s32.totalorder %s28, 1
          %s455 = scalar_select %p454, %s28, 1
          %s456 = scalar_lea.vmem %s11, %s455
        $region64: #{global_pointer_forward.1} parent=23 // pred_fallthru
          _
      $region24: #{global_pointer_forward.1} parent=5 // pred_fallthru
        _
      %p457 = scmp.le.s32.totalorder 1, %s21
      %p458 = scmp.lt.s32.totalorder %s21, 9
      %p459 = pnand %p457, %p458
      %p460 = pneg %p459
      // Predicated region
      $region65: #{global_pointer_forward.1} parent=5 // pred_check
        _
      $region66: #{global_pointer_forward.1} parent=5 // pred_check_branch
        %462 = sbr.rel (%p459) target = $region68
      $region67: #{global_pointer_forward.1} parent=5 // pred_region
        %s463 = ssub.s32 %s21, 1
        %p464 = scmp.lt.s32.totalorder %s30, 1
        %s465 = scalar_select %p464, %s30, 1
        %s466 = smul.addr %s465, 8
        %s467 = scalar_lea.vmem %s0, %s466
        %p468 = pneg %p59
        %p469 = pneg %p56
        %p470 = scmp.lt.s32.totalorder %s31, 3
        %s471 = scalar_select %p470, %s31, 3
        %s472 = smul.addr %s471, 4
        %s473 = smul.addr %s472, 8
        %s474 = scalar_lea.vmem %s1, %s473
        %p475 = pneg %p85
        %p476 = pneg %p82
        %p477 = scmp.lt.s32.totalorder %s31, 3
        %s478 = scalar_select %p477, %s31, 3
        %s479 = smul.addr %s478, 4
        %s480 = smul.addr %s479, 8
        %s481 = scalar_lea.vmem %s2, %s480
        %p482 = pneg %p111
        %p483 = pneg %p108
        %p484 = scmp.lt.s32.totalorder %s31, 3
        %s485 = scalar_select %p484, %s31, 3
        %s486 = smul.addr %s485, 4
        %s487 = smul.addr %s486, 8
        %s488 = scalar_lea.vmem %s3, %s487
        %p489 = pneg %p137
        %p490 = pneg %p134
        %p491 = scmp.lt.s32.totalorder %s31, 3
        %s492 = scalar_select %p491, %s31, 3
        %s493 = smul.addr %s492, 4
        %s494 = smul.addr %s493, 8
        %s495 = scalar_lea.vmem %s4, %s494
        %p496 = pneg %p163
        %p497 = pneg %p160
        %p498 = scmp.lt.s32.totalorder %s31, 3
        %s499 = scalar_select %p498, %s31, 3
        %s500 = scalar_lea.vmem %s5, %s499
        %p501 = pneg %p189
        %p502 = pneg %p186
        %p503 = scmp.lt.s32.totalorder %s31, 3
        %s504 = scalar_select %p503, %s31, 3
        %s505 = scalar_lea.vmem %s6, %s504
        %p506 = pneg %p215
        %p507 = pneg %p212
        %p508 = scmp.lt.s32.totalorder %s31, 3
        %s509 = scalar_select %p508, %s31, 3
        %s510 = scalar_lea.vmem %s7, %s509
        %p511 = pneg %p241
        %p512 = pneg %p238
        %p513 = scmp.lt.s32.totalorder %s31, 3
        %s514 = scalar_select %p513, %s31, 3
        %s515 = scalar_lea.vmem %s8, %s514
        %p516 = pneg %p267
        %p517 = pneg %p264
        %p518 = pneg %p288
        %p519 = pneg %p285
        %p520 = pneg %p309
        %p521 = pneg %p306
        %p522 = scmp.lt.s32.totalorder %s30, 1
        %s523 = scalar_select %p522, %s30, 1
        %s524 = scalar_lea.vmem %s11, %s523
        %p525 = pneg %p335
        %p526 = pneg %p332
        %p527 = pneg %p363
        %p528 = pneg %p360
        %s529 = sand.u32 %s350, 1
        %s530 = scalar_lea.sflag [#allocation3], %s529
        %s531 = sand.u32 %s350, 1
        %s532 = smul.addr %s531, 8
        %s533 = scalar_lea.vmem [#allocation2], %s532
        %p534 = scmp.lt.s32.totalorder %s30, 1
        %s535 = scalar_select %p534, %s30, 1
        %s536 = smul.addr %s535, 8
        %s537 = scalar_lea.vmem %s0, %s536
        %p538 = scmp.lt.s32.totalorder %s31, 3
        %s539 = scalar_select %p538, %s31, 3
        %s540 = smul.addr %s539, 4
        %s541 = smul.addr %s540, 8
        %s542 = scalar_lea.vmem %s1, %s541
        %p543 = scmp.lt.s32.totalorder %s31, 3
        %s544 = scalar_select %p543, %s31, 3
        %s545 = smul.addr %s544, 4
        %s546 = smul.addr %s545, 8
        %s547 = scalar_lea.vmem %s2, %s546
        %p548 = scmp.lt.s32.totalorder %s31, 3
        %s549 = scalar_select %p548, %s31, 3
        %s550 = smul.addr %s549, 4
        %s551 = smul.addr %s550, 8
        %s552 = scalar_lea.vmem %s3, %s551
        %p553 = scmp.lt.s32.totalorder %s31, 3
        %s554 = scalar_select %p553, %s31, 3
        %s555 = smul.addr %s554, 4
        %s556 = smul.addr %s555, 8
        %s557 = scalar_lea.vmem %s4, %s556
        %p558 = scmp.lt.s32.totalorder %s31, 3
        %s559 = scalar_select %p558, %s31, 3
        %s560 = scalar_lea.vmem %s5, %s559
        %p561 = scmp.lt.s32.totalorder %s31, 3
        %s562 = scalar_select %p561, %s31, 3
        %s563 = scalar_lea.vmem %s6, %s562
        %p564 = scmp.lt.s32.totalorder %s31, 3
        %s565 = scalar_select %p564, %s31, 3
        %s566 = scalar_lea.vmem %s7, %s565
        %p567 = scmp.lt.s32.totalorder %s31, 3
        %s568 = scalar_select %p567, %s31, 3
        %s569 = scalar_lea.vmem %s8, %s568
        %p570 = scmp.lt.s32.totalorder %s30, 1
        %s571 = scalar_select %p570, %s30, 1
        %s572 = scalar_lea.vmem %s11, %s571
        %v573 = vld [vmem:[%s537] sm:$0xff]
        %v574 = vxor.u32 %v573, 2147483648
        %v575 = vmul.f32 %v574, 1.442695
        %v576 = vpow.pop %v575
        %v577 = vadd.f32 %v576, 1.0
        %v578 = vrcp.pop %v577
        %v579 = vmul.f32 1.0, %v578
        %v580 = vxor.u32 %v579, 2147483648
        %v581 = vmul.f32 %v580, 1.442695
        %v582 = vpow.pop %v581
        %v583 = vadd.f32 %v582, 1.0
        %v584 = vrcp.pop %v583
        %v585 = vmul.f32 1.0, %v584
        %v586 = vld [vmem:[%s9] sm:$0xff]
        %v587 = vld [vmem:[%s10] sm:$0xff]
        %v588 = vld [vmem:[%s542] sm:$0xff]
        %v589 = vld [vmem:[%s542 + $0x8] sm:$0xff]
        %v590 = vld [vmem:[%s542 + $0x10] sm:$0xff]
        %v591 = vld [vmem:[%s542 + $0x18] sm:$0xff]
        %v592 = vld [vmem:[%s560] sm:$0x1]
        %v594 = vlaneseq
        %v595 = vshrl.u32 %v594, 7
        %v596 = vsub.s32 0, %v595
        %v597 = vrot.slane %v592, %v596
        %vm599 = vcmask 261120
        %v601 = vsel %vm599, %v585, 0
        %603 = vmatprep.subr.mxu0 0.0
        %604 = vmatpush1.msra.mxu0 0.0
        %605 = vmatprep.subr.mxu0 0.0
        %606 = vmatpush1.msra.mxu0 0.0
        %607 = vmatprep.subr.mxu0 0.0
        %608 = vmatpush1.msra.mxu0 0.0
        %609 = vmatprep.subr.mxu0 0.0
        %610 = vmatpush1.msra.mxu0 0.0
        %611 = vmatprep.subr.mxu0 0.0
        %612 = vmatpush1.msra.mxu0 0.0
        %613 = vmatprep.subr.mxu0 0.0
        %614 = vmatpush1.msra.mxu0 0.0
        %615 = vmatprep.subr.mxu0 0.0
        %616 = vmatpush1.msra.mxu0 0.0
        %617 = vmatprep.subr.mxu0 0.0
        %618 = vmatpush1.msra.mxu0 0.0
        %619 = vmatprep.subr.mxu0 0.0
        %620 = vmatpush1.msra.mxu0 0.0
        %621 = vmatprep.subr.mxu0 0.0
        %622 = vmatpush1.msra.mxu0 0.0
        %623 = vmatprep.subr.mxu0 0.0
        %624 = vmatpush1.msra.mxu0 0.0
        %625 = vmatprep.subr.mxu0 0.0
        %626 = vmatpush1.msra.mxu0 0.0
        %627 = vmatprep.subr.mxu0 0.0
        %628 = vmatpush1.msra.mxu0 %v591
        %629 = vmatprep.subr.mxu0 0.0
        %630 = vmatpush1.msra.mxu0 %v590
        %631 = vmatprep.subr.mxu0 0.0
        %632 = vmatpush1.msra.mxu0 %v589
        %633 = vmatprep.subr.mxu0 0.0
        %634 = vmatpush1.msra.mxu0 %v588
        %635 = vmatprep.subr.mxu0 0.0
        %636 = vmatpush2.msra.mxu0 0.0
        %637 = vmatprep.subr.mxu0 0.0
        %638 = vmatpush2.msra.mxu0 0.0
        %639 = vmatprep.subr.mxu0 0.0
        %640 = vmatpush2.msra.mxu0 0.0
        %641 = vmatprep.subr.mxu0 0.0
        %642 = vmatpush2.msra.mxu0 0.0
        %643 = vmatprep.subr.mxu0 0.0
        %644 = vmatpush2.msra.mxu0 0.0
        %645 = vmatprep.subr.mxu0 0.0
        %646 = vmatpush2.msra.mxu0 0.0
        %647 = vmatprep.subr.mxu0 0.0
        %648 = vmatpush2.msra.mxu0 0.0
        %649 = vmatprep.subr.mxu0 0.0
        %650 = vmatpush2.msra.mxu0 0.0
        %651 = vmatprep.subr.mxu0 0.0
        %652 = vmatpush2.msra.mxu0 0.0
        %653 = vmatprep.subr.mxu0 0.0
        %654 = vmatpush2.msra.mxu0 0.0
        %655 = vmatprep.subr.mxu0 0.0
        %656 = vmatpush2.msra.mxu0 0.0
        %657 = vmatprep.subr.mxu0 0.0
        %658 = vmatpush2.msra.mxu0 0.0
        %659 = vmatprep.subr.mxu0 0.0
        %660 = vmatpush2.msra.mxu0 0.0
        %661 = vmatprep.subr.mxu0 0.0
        %662 = vmatpush2.msra.mxu0 0.0
        %663 = vmatprep.subr.mxu0 0.0
        %664 = vmatpush2.msra.mxu0 0.0
        %665 = vmatprep.subr.mxu0 0.0
        %666 = vmatpush2.msra.mxu0 0.0
        %667 = vmatprep.mubr.f32.mxu0 0.0
        %668 = vmatmul.mubr.f32.gmra.mxu0 %v601
        %v669 = vpop.f32.mrf.mxu0
        %v670 = vadd.f32 %v597, %v669
        %v671 = vpop.f32.mrf.mxu0
        %672 = vdwg.mxu0
        %v673 = vld [vmem:[%s547] sm:$0xff]
        %v674 = vld [vmem:[%s547 + $0x8] sm:$0xff]
        %v675 = vld [vmem:[%s547 + $0x10] sm:$0xff]
        %v676 = vld [vmem:[%s547 + $0x18] sm:$0xff]
        %v677 = vld [vmem:[%s563] sm:$0x1]
        %v679 = vlaneseq
        %v680 = vshrl.u32 %v679, 7
        %v681 = vsub.s32 0, %v680
        %v682 = vrot.slane %v677, %v681
        %684 = vmatprep.subr.mxu0 0.0
        %685 = vmatpush1.msra.mxu0 0.0
        %686 = vmatprep.subr.mxu0 0.0
        %687 = vmatpush1.msra.mxu0 0.0
        %688 = vmatprep.subr.mxu0 0.0
        %689 = vmatpush1.msra.mxu0 0.0
        %690 = vmatprep.subr.mxu0 0.0
        %691 = vmatpush1.msra.mxu0 0.0
        %692 = vmatprep.subr.mxu0 0.0
        %693 = vmatpush1.msra.mxu0 0.0
        %694 = vmatprep.subr.mxu0 0.0
        %695 = vmatpush1.msra.mxu0 0.0
        %696 = vmatprep.subr.mxu0 0.0
        %697 = vmatpush1.msra.mxu0 0.0
        %698 = vmatprep.subr.mxu0 0.0
        %699 = vmatpush1.msra.mxu0 0.0
        %700 = vmatprep.subr.mxu0 0.0
        %701 = vmatpush1.msra.mxu0 0.0
        %702 = vmatprep.subr.mxu0 0.0
        %703 = vmatpush1.msra.mxu0 0.0
        %704 = vmatprep.subr.mxu0 0.0
        %705 = vmatpush1.msra.mxu0 0.0
        %706 = vmatprep.subr.mxu0 0.0
        %707 = vmatpush1.msra.mxu0 0.0
        %708 = vmatprep.subr.mxu0 0.0
        %709 = vmatpush1.msra.mxu0 %v676
        %710 = vmatprep.subr.mxu0 0.0
        %711 = vmatpush1.msra.mxu0 %v675
        %712 = vmatprep.subr.mxu0 0.0
        %713 = vmatpush1.msra.mxu0 %v674
        %714 = vmatprep.subr.mxu0 0.0
        %715 = vmatpush1.msra.mxu0 %v673
        %716 = vmatprep.subr.mxu0 0.0
        %717 = vmatpush2.msra.mxu0 0.0
        %718 = vmatprep.subr.mxu0 0.0
        %719 = vmatpush2.msra.mxu0 0.0
        %720 = vmatprep.subr.mxu0 0.0
        %721 = vmatpush2.msra.mxu0 0.0
        %722 = vmatprep.subr.mxu0 0.0
        %723 = vmatpush2.msra.mxu0 0.0
        %724 = vmatprep.subr.mxu0 0.0
        %725 = vmatpush2.msra.mxu0 0.0
        %726 = vmatprep.subr.mxu0 0.0
        %727 = vmatpush2.msra.mxu0 0.0
        %728 = vmatprep.subr.mxu0 0.0
        %729 = vmatpush2.msra.mxu0 0.0
        %730 = vmatprep.subr.mxu0 0.0
        %731 = vmatpush2.msra.mxu0 0.0
        %732 = vmatprep.subr.mxu0 0.0
        %733 = vmatpush2.msra.mxu0 0.0
        %734 = vmatprep.subr.mxu0 0.0
        %735 = vmatpush2.msra.mxu0 0.0
        %736 = vmatprep.subr.mxu0 0.0
        %737 = vmatpush2.msra.mxu0 0.0
        %738 = vmatprep.subr.mxu0 0.0
        %739 = vmatpush2.msra.mxu0 0.0
        %740 = vmatprep.subr.mxu0 0.0
        %741 = vmatpush2.msra.mxu0 0.0
        %742 = vmatprep.subr.mxu0 0.0
        %743 = vmatpush2.msra.mxu0 0.0
        %744 = vmatprep.subr.mxu0 0.0
        %745 = vmatpush2.msra.mxu0 0.0
        %746 = vmatprep.subr.mxu0 0.0
        %747 = vmatpush2.msra.mxu0 0.0
        %748 = vmatprep.mubr.f32.mxu0 0.0
        %749 = vmatmul.mubr.f32.gmra.mxu0 %v601
        %v750 = vpop.f32.mrf.mxu0
        %v751 = vadd.f32 %v682, %v750
        %v752 = vpop.f32.mrf.mxu0
        %753 = vdwg.mxu0
        %v754 = vld [vmem:[%s552] sm:$0xff]
        %v755 = vld [vmem:[%s552 + $0x8] sm:$0xff]
        %v756 = vld [vmem:[%s552 + $0x10] sm:$0xff]
        %v757 = vld [vmem:[%s552 + $0x18] sm:$0xff]
        %v758 = vld [vmem:[%s566] sm:$0x1]
        %v760 = vlaneseq
        %v761 = vshrl.u32 %v760, 7
        %v762 = vsub.s32 0, %v761
        %v763 = vrot.slane %v758, %v762
        %765 = vmatprep.subr.mxu0 0.0
        %766 = vmatpush1.msra.mxu0 0.0
        %767 = vmatprep.subr.mxu0 0.0
        %768 = vmatpush1.msra.mxu0 0.0
        %769 = vmatprep.subr.mxu0 0.0
        %770 = vmatpush1.msra.mxu0 0.0
        %771 = vmatprep.subr.mxu0 0.0
        %772 = vmatpush1.msra.mxu0 0.0
        %773 = vmatprep.subr.mxu0 0.0
        %774 = vmatpush1.msra.mxu0 0.0
        %775 = vmatprep.subr.mxu0 0.0
        %776 = vmatpush1.msra.mxu0 0.0
        %777 = vmatprep.subr.mxu0 0.0
        %778 = vmatpush1.msra.mxu0 0.0
        %779 = vmatprep.subr.mxu0 0.0
        %780 = vmatpush1.msra.mxu0 0.0
        %781 = vmatprep.subr.mxu0 0.0
        %782 = vmatpush1.msra.mxu0 0.0
        %783 = vmatprep.subr.mxu0 0.0
        %784 = vmatpush1.msra.mxu0 0.0
        %785 = vmatprep.subr.mxu0 0.0
        %786 = vmatpush1.msra.mxu0 0.0
        %787 = vmatprep.subr.mxu0 0.0
        %788 = vmatpush1.msra.mxu0 0.0
        %789 = vmatprep.subr.mxu0 0.0
        %790 = vmatpush1.msra.mxu0 %v757
        %791 = vmatprep.subr.mxu0 0.0
        %792 = vmatpush1.msra.mxu0 %v756
        %793 = vmatprep.subr.mxu0 0.0
        %794 = vmatpush1.msra.mxu0 %v755
        %795 = vmatprep.subr.mxu0 0.0
        %796 = vmatpush1.msra.mxu0 %v754
        %797 = vmatprep.subr.mxu0 0.0
        %798 = vmatpush2.msra.mxu0 0.0
        %799 = vmatprep.subr.mxu0 0.0
        %800 = vmatpush2.msra.mxu0 0.0
        %801 = vmatprep.subr.mxu0 0.0
        %802 = vmatpush2.msra.mxu0 0.0
        %803 = vmatprep.subr.mxu0 0.0
        %804 = vmatpush2.msra.mxu0 0.0
        %805 = vmatprep.subr.mxu0 0.0
        %806 = vmatpush2.msra.mxu0 0.0
        %807 = vmatprep.subr.mxu0 0.0
        %808 = vmatpush2.msra.mxu0 0.0
        %809 = vmatprep.subr.mxu0 0.0
        %810 = vmatpush2.msra.mxu0 0.0
        %811 = vmatprep.subr.mxu0 0.0
        %812 = vmatpush2.msra.mxu0 0.0
        %813 = vmatprep.subr.mxu0 0.0
        %814 = vmatpush2.msra.mxu0 0.0
        %815 = vmatprep.subr.mxu0 0.0
        %816 = vmatpush2.msra.mxu0 0.0
        %817 = vmatprep.subr.mxu0 0.0
        %818 = vmatpush2.msra.mxu0 0.0
        %819 = vmatprep.subr.mxu0 0.0
        %820 = vmatpush2.msra.mxu0 0.0
        %821 = vmatprep.subr.mxu0 0.0
        %822 = vmatpush2.msra.mxu0 0.0
        %823 = vmatprep.subr.mxu0 0.0
        %824 = vmatpush2.msra.mxu0 0.0
        %825 = vmatprep.subr.mxu0 0.0
        %826 = vmatpush2.msra.mxu0 0.0
        %827 = vmatprep.subr.mxu0 0.0
        %828 = vmatpush2.msra.mxu0 0.0
        %829 = vmatprep.mubr.f32.mxu0 0.0
        %830 = vmatmul.mubr.f32.gmra.mxu0 %v601
        %v831 = vpop.f32.mrf.mxu0
        %v832 = vadd.f32 %v763, %v831
        %v833 = vpop.f32.mrf.mxu0
        %834 = vdwg.mxu0
        %v835 = vld [vmem:[%s557] sm:$0xff]
        %v836 = vld [vmem:[%s557 + $0x8] sm:$0xff]
        %v837 = vld [vmem:[%s557 + $0x10] sm:$0xff]
        %v838 = vld [vmem:[%s557 + $0x18] sm:$0xff]
        %v839 = vld [vmem:[%s569] sm:$0x1]
        %v841 = vlaneseq
        %v842 = vshrl.u32 %v841, 7
        %v843 = vsub.s32 0, %v842
        %v844 = vrot.slane %v839, %v843
        %846 = vmatprep.subr.mxu0 0.0
        %847 = vmatpush1.msra.mxu0 0.0
        %848 = vmatprep.subr.mxu0 0.0
        %849 = vmatpush1.msra.mxu0 0.0
        %850 = vmatprep.subr.mxu0 0.0
        %851 = vmatpush1.msra.mxu0 0.0
        %852 = vmatprep.subr.mxu0 0.0
        %853 = vmatpush1.msra.mxu0 0.0
        %854 = vmatprep.subr.mxu0 0.0
        %855 = vmatpush1.msra.mxu0 0.0
        %856 = vmatprep.subr.mxu0 0.0
        %857 = vmatpush1.msra.mxu0 0.0
        %858 = vmatprep.subr.mxu0 0.0
        %859 = vmatpush1.msra.mxu0 0.0
        %860 = vmatprep.subr.mxu0 0.0
        %861 = vmatpush1.msra.mxu0 0.0
        %862 = vmatprep.subr.mxu0 0.0
        %863 = vmatpush1.msra.mxu0 0.0
        %864 = vmatprep.subr.mxu0 0.0
        %865 = vmatpush1.msra.mxu0 0.0
        %866 = vmatprep.subr.mxu0 0.0
        %867 = vmatpush1.msra.mxu0 0.0
        %868 = vmatprep.subr.mxu0 0.0
        %869 = vmatpush1.msra.mxu0 0.0
        %870 = vmatprep.subr.mxu0 0.0
        %871 = vmatpush1.msra.mxu0 %v838
        %872 = vmatprep.subr.mxu0 0.0
        %873 = vmatpush1.msra.mxu0 %v837
        %874 = vmatprep.subr.mxu0 0.0
        %875 = vmatpush1.msra.mxu0 %v836
        %876 = vmatprep.subr.mxu0 0.0
        %877 = vmatpush1.msra.mxu0 %v835
        %878 = vmatprep.subr.mxu0 0.0
        %879 = vmatpush2.msra.mxu0 0.0
        %880 = vmatprep.subr.mxu0 0.0
        %881 = vmatpush2.msra.mxu0 0.0
        %882 = vmatprep.subr.mxu0 0.0
        %883 = vmatpush2.msra.mxu0 0.0
        %884 = vmatprep.subr.mxu0 0.0
        %885 = vmatpush2.msra.mxu0 0.0
        %886 = vmatprep.subr.mxu0 0.0
        %887 = vmatpush2.msra.mxu0 0.0
        %888 = vmatprep.subr.mxu0 0.0
        %889 = vmatpush2.msra.mxu0 0.0
        %890 = vmatprep.subr.mxu0 0.0
        %891 = vmatpush2.msra.mxu0 0.0
        %892 = vmatprep.subr.mxu0 0.0
        %893 = vmatpush2.msra.mxu0 0.0
        %894 = vmatprep.subr.mxu0 0.0
        %895 = vmatpush2.msra.mxu0 0.0
        %896 = vmatprep.subr.mxu0 0.0
        %897 = vmatpush2.msra.mxu0 0.0
        %898 = vmatprep.subr.mxu0 0.0
        %899 = vmatpush2.msra.mxu0 0.0
        %900 = vmatprep.subr.mxu0 0.0
        %901 = vmatpush2.msra.mxu0 0.0
        %902 = vmatprep.subr.mxu0 0.0
        %903 = vmatpush2.msra.mxu0 0.0
        %904 = vmatprep.subr.mxu0 0.0
        %905 = vmatpush2.msra.mxu0 0.0
        %906 = vmatprep.subr.mxu0 0.0
        %907 = vmatpush2.msra.mxu0 0.0
        %908 = vmatprep.subr.mxu0 0.0
        %909 = vmatpush2.msra.mxu0 0.0
        %910 = vmatprep.mubr.f32.mxu0 0.0
        %911 = vmatmul.mubr.f32.gmra.mxu0 %v601
        %v912 = vpop.f32.mrf.mxu0
        %v913 = vadd.f32 %v844, %v912
        %v914 = vpop.f32.mrf.mxu0
        %915 = vdwg.mxu0
        %v916 = vmul.f32 %v670, %v586
        %v917 = vmul.f32 %v751, %v587
        %v918 = vadd.f32 %v916, %v917
        %v919 = vmul.f32 %v832, %v586
        %v920 = vmul.f32 %v913, %v587
        %v921 = vadd.f32 %v919, %v920
        %v923 = vsel %vm599, %v918, 0
        %v926 = vsel %vm599, %v921, 0
        %928 = vmatprep.subr.mxu0 0.0
        %929 = vmatpush1.xpose.msra.mxu0 0.0
        %930 = vmatprep.subr.mxu0 0.0
        %931 = vmatpush1.xpose.msra.mxu0 0.0
        %932 = vmatprep.subr.mxu0 0.0
        %933 = vmatpush1.xpose.msra.mxu0 0.0
        %934 = vmatprep.subr.mxu0 0.0
        %935 = vmatpush1.xpose.msra.mxu0 0.0
        %936 = vmatprep.subr.mxu0 0.0
        %937 = vmatpush1.xpose.msra.mxu0 0.0
        %938 = vmatprep.subr.mxu0 0.0
        %939 = vmatpush1.xpose.msra.mxu0 0.0
        %940 = vmatprep.subr.mxu0 0.0
        %941 = vmatpush1.xpose.msra.mxu0 0.0
        %942 = vmatprep.subr.mxu0 0.0
        %943 = vmatpush1.xpose.msra.mxu0 0.0
        %944 = vmatprep.subr.mxu0 0.0
        %945 = vmatpush1.xpose.msra.mxu0 0.0
        %946 = vmatprep.subr.mxu0 0.0
        %947 = vmatpush1.xpose.msra.mxu0 0.0
        %948 = vmatprep.subr.mxu0 0.0
        %949 = vmatpush1.xpose.msra.mxu0 0.0
        %950 = vmatprep.subr.mxu0 0.0
        %951 = vmatpush1.xpose.msra.mxu0 0.0
        %952 = vmatprep.subr.mxu0 0.0
        %953 = vmatpush1.xpose.msra.mxu0 0.0
        %954 = vmatprep.subr.mxu0 0.0
        %955 = vmatpush1.xpose.msra.mxu0 0.0
        %956 = vmatprep.subr.mxu0 0.0
        %957 = vmatpush1.xpose.msra.mxu0 0.0
        %958 = vmatprep.subr.mxu0 0.0
        %959 = vmatpush1.xpose.msra.mxu0 %v926
        %960 = vmatprep.subr.mxu0 0.0
        %961 = vmatpush2.xpose.msra.mxu0 0.0
        %962 = vmatprep.subr.mxu0 0.0
        %963 = vmatpush2.xpose.msra.mxu0 0.0
        %964 = vmatprep.subr.mxu0 0.0
        %965 = vmatpush2.xpose.msra.mxu0 0.0
        %966 = vmatprep.subr.mxu0 0.0
        %967 = vmatpush2.xpose.msra.mxu0 0.0
        %968 = vmatprep.subr.mxu0 0.0
        %969 = vmatpush2.xpose.msra.mxu0 0.0
        %970 = vmatprep.subr.mxu0 0.0
        %971 = vmatpush2.xpose.msra.mxu0 0.0
        %972 = vmatprep.subr.mxu0 0.0
        %973 = vmatpush2.xpose.msra.mxu0 0.0
        %974 = vmatprep.subr.mxu0 0.0
        %975 = vmatpush2.xpose.msra.mxu0 0.0
        %976 = vmatprep.subr.mxu0 0.0
        %977 = vmatpush2.xpose.msra.mxu0 0.0
        %978 = vmatprep.subr.mxu0 0.0
        %979 = vmatpush2.xpose.msra.mxu0 0.0
        %980 = vmatprep.subr.mxu0 0.0
        %981 = vmatpush2.xpose.msra.mxu0 0.0
        %982 = vmatprep.subr.mxu0 0.0
        %983 = vmatpush2.xpose.msra.mxu0 0.0
        %984 = vmatprep.subr.mxu0 0.0
        %985 = vmatpush2.xpose.msra.mxu0 0.0
        %986 = vmatprep.subr.mxu0 0.0
        %987 = vmatpush2.xpose.msra.mxu0 0.0
        %988 = vmatprep.subr.mxu0 0.0
        %989 = vmatpush2.xpose.msra.mxu0 0.0
        %990 = vmatprep.subr.mxu0 0.0
        %991 = vmatpush2.xpose.msra.mxu0 0.0
        %992 = vmatprep.mubr.f32.mxu0 0.0
        %993 = vmatmul.mubr.f32.gmra.mxu0 %v923
        %v994 = vpop.f32.mrf.mxu0
        %v995 = vadd.f32 0.0, %v994
        %v996 = vpop.f32.mrf.mxu0
        %997 = vdwg.mxu0
        %v998 = vld [vmem:[%s572] sm:$0x1]
        %v1000 = vlaneseq
        %v1001 = vshrl.u32 %v1000, 7
        %v1002 = vsub.s32 0, %v1001
        %v1003 = vrot.slane %v998, %v1002
        %v1005 = vmul.f32 %v995, %v1003
        %v1006 = vsub.f32 1.0, %v998
        %v1007 = vmul.f32 %v1006, 1e+12
        %v1009 = vlaneseq
        %v1010 = vshrl.u32 %v1009, 7
        %v1011 = vsub.s32 0, %v1010
        %v1012 = vrot.slane %v1007, %v1011
        %v1014 = vsub.f32 %v1005, %v1012
        %v1015 = vlaneseq
        %v1016 = vshrl.u32 %v1015, 7
        %v1017 = vlaneseq
        %v1018 = vand.u32 %v1017, 127
        %vm1019 = vcmp.gt.s32.totalorder %v1016, %v1018
        %v1020 = vsub.f32 %v1014, 1e+12
        %v1021 = vsel %vm1019, %v1020, %v1014
        %v1022 = vmul.f32 %v1021, 0.17677669
        %vm1023 = vcmask 64512
        %1024 = vst.msk [vmem:[%s533] sm:$0xff] %vm1023, %v1022
        %s1025 = sand.u32 %s350, 1
        %s1026 = scalar_lea.sflag [#allocation3], %s1025
        %s1027 = sand.u32 %s350, 1
        %s1028 = smul.addr %s1027, 8
        %s1029 = scalar_lea.vmem [#allocation2], %s1028
        // Predicated region
        $region69: #{global_pointer_forward.1} parent=67 // pred_check
          %p1030 = pneg %p360
        $region70: #{global_pointer_forward.1} parent=67 // pred_check_branch
          %1032 = sbr.rel (%p1030) target = $region72
        $region71: #{global_pointer_forward.1} parent=67 // pred_region
          %s1034 = ssub.s32 128, 128
          %1035 = vsyncadd %s1026, %s1034
          %s1036 = smul.addr %s30, 4
          %s1037 = sadd.s32 %s31, %s1036
          %s1038 = smul.addr %s1037, 128
          %s1039 = scalar_lea.hbm %s12, %s1038
          %s1041 = sshll.u32 %s1029, 4
          %s1042 = int_to_ptr.vmem [resolvable:$true] %s1041
          %1044 = dma.vmem_to_hbm [thread:$0]  %s1042, 128, %s1039, %s1026
        $region72: #{global_pointer_forward.1} parent=67 // pred_fallthru
          _
      $region68: #{global_pointer_forward.1} parent=5 // pred_fallthru
        _
      %p1045 = scmp.le.s32.totalorder 2, %s21
      // Predicated region
      $region73: #{global_pointer_forward.1} parent=5 // pred_check
        %p1046 = pneg %p1045
      $region74: #{global_pointer_forward.1} parent=5 // pred_check_branch
        %1048 = sbr.rel (%p1046) target = $region76
      $region75: #{global_pointer_forward.1} parent=5 // pred_region
        %s1049 = ssub.s32 %s21, 2
        // Predicated region
        $region77: #{global_pointer_forward.1} parent=75 // pred_check
          %p1050 = pneg %p366
        $region78: #{global_pointer_forward.1} parent=75 // pred_check_branch
          %1052 = sbr.rel (%p1050) target = $region80
        $region79: #{global_pointer_forward.1} parent=75 // pred_region
          %s1053 = sand.u32 %s351, 1
          %s1054 = scalar_lea.sflag [#allocation3], %s1053
          %s1055 = sand.u32 %s351, 1
          %s1056 = smul.addr %s1055, 8
          %s1057 = scalar_lea.vmem [#allocation2], %s1056
          %1058 = dma.done %s1054, 128
        $region80: #{global_pointer_forward.1} parent=75 // pred_fallthru
          _
      $region76: #{global_pointer_forward.1} parent=5 // pred_fallthru
        _
    $region6: #{global_pointer_forward.1} parent=1 // loop_footer
      %s25 = sadd.s32 1, %s21
    $region7: #{global_pointer_forward.1} parent=1 // loop_footer_branch
      %20 = sbr.rel target = $region3
    $region8: #{global_pointer_forward.1} parent=1 // loop_exit
      _
    %1059 = vsyncpa [#allocation3], 1
    %s1060 = scalar_lea.sflag [#allocation3], 1
    %1061 = vsyncpa %s1060, 1

</llo_original>
